<compile_context>
chip_gen: v5e
topology: v5e:2x2
jax: 0.10.0
libtpu: 0.0.40
codegen_flags: <defaults>
</compile_context>

<pallas_src>
import math

import jax
import jax.numpy as jnp
from jax import lax
from jax.experimental import pallas as pl
from jax.experimental.pallas import tpu as pltpu


# ----------------------------- table construction (matches PyTorch) ----------

def get_embedding_table(n_embeddings, embedding_dim):
    """JAX port of ConstantPositionalEmbedding.get_embedding."""
    n = n_embeddings + 1
    half_dim = embedding_dim // 2
    scale = math.log(10000.0) / (half_dim - 1)
    freqs = jnp.exp(jnp.arange(half_dim, dtype=jnp.float32) * -scale)
    args = jnp.arange(n, dtype=jnp.float32)[:, None] * freqs[None, :]
    emb = jnp.concatenate([jnp.sin(args), jnp.cos(args)], axis=1)  # (n, 2*half)
    emb = emb.at[0, :].set(0.0)                                    # padding row
    if embedding_dim % 2:
        emb = jnp.concatenate([emb, jnp.zeros((n, 1), jnp.float32)], axis=1)
    return emb                                                     # (n, D)


# ----------------------------- Pallas kernel ---------------------------------

def pos_embed_kernel(pos_sref, table_ref, o_ref):
    """Row gather for one (batch, seq-tile) block.

    pos_sref  : (B, S)            int32  positions, scalar-prefetched to SMEM
    table_ref : (Npad, D)         f32    full table, VMEM-resident
                                         (constant index_map -> no re-DMA)
    o_ref     : (1, seq_tile, D)  f32    gathered embeddings (lane-dense)
    """
    b = pl.program_id(0)
    t = pl.program_id(1)
    ts = o_ref.shape[1]
    base = t * ts

    def copy_row(i, carry):
        p = pos_sref[b, base + i]                         # scalar SMEM read
        # Dynamic sublane slice copy, (1, D) VMEM -> VMEM; no cross-lane work.
        o_ref[0, pl.ds(i, 1), :] = table_ref[pl.ds(p, 1), :]
        return carry

    lax.fori_loop(0, ts, copy_row, 0, unroll=(ts <= 64))


# ----------------------------- wrapper ----------------------------------------

def constant_positional_embedding(positions, table, *, seq_tile=None):
    """positions: (B, S) int32, table: (N, D) f32 -> (B, S, D) f32."""
    B, S = positions.shape
    N, D = table.shape

    # Pad table rows to a multiple of 8 (sublane tile). Positions never index
    # the padding, so this is free for correctness.
    pad = (-N) % 8
    if pad:
        table = jnp.pad(table, ((0, pad), (0, 0)))
    n_pad = N + pad

    if seq_tile is None:
        seq_tile = S
        for cand in (1024, 512, 256, 128, 64, 32, 16, 8):
            if S % cand == 0:
                # With B == 1, keep >= 2 seq tiles so both v7x TCs get work.
                if B == 1 and cand == S and S >= 16:
                    continue
                seq_tile = cand
                break
    assert S % seq_tile == 0, "seq_tile must divide S"

    grid = (B, S // seq_tile)

    table_bytes = n_pad * D * 4
    # v7x VMEM guard: 64 MiB physical (32 MiB scoped default) vs 128 MiB on
    # v5e/v6e.  Fail loudly instead of OOMing with a resident regrown table.
    assert table_bytes <= 24 * 1024 * 1024, (
        "table too large to keep VMEM-resident; use the non-resident "
        "pl.Element(1) DMA-gather path (see TODO at top of file)")

    # Approximate VMEM need: double-buffered table + double-buffered out tile.
    vmem_need = 2 * table_bytes + 2 * seq_tile * D * 4 + (1 << 20)
    compiler_kwargs = dict(dimension_semantics=("parallel", "parallel"))
    if vmem_need > 16 * 1024 * 1024:
        compiler_kwargs["vmem_limit_bytes"] = min(vmem_need, 100 * 1024 * 1024)

    return pl.pallas_call(
        pos_embed_kernel,
        out_shape=jax.ShapeDtypeStruct((B, S, D), jnp.float32),
        grid_spec=pltpu.PrefetchScalarGridSpec(
            num_scalar_prefetch=1,                 # positions -> SMEM
            grid=grid,
            in_specs=[
                # full table, constant index_map -> resident, not re-copied
                pl.BlockSpec((n_pad, D), lambda b, t, pos: (0, 0)),
            ],
            out_specs=pl.BlockSpec((1, seq_tile, D), lambda b, t, pos: (b, t, 0)),
        ),
        compiler_params=pltpu.CompilerParams(**compiler_kwargs),
    )(positions.astype(jnp.int32), table)


def constant_positional_embedding_forward(positions, table, embedding_dim):
    """Mirrors the PyTorch forward, including the host-side table-regrow check."""
    _, S = positions.shape
    if S >= table.shape[0]:                             # host-side, like PyTorch
        table = get_embedding_table(S, embedding_dim)
    out = constant_positional_embedding(positions, table)
    return out, table


# ----------------------------- main --------------------------------------------

if __name__ == "__main__":
    B, S, D = 2, 8, 128
    INIT_N_EMBEDDINGS = 1024                            # module default

    key = jax.random.PRNGKey(0)
    k_pos, = jax.random.split(key, 1)

    table = get_embedding_table(INIT_N_EMBEDDINGS, D)   # (1025, 128)

    positions = jax.random.randint(k_pos, (B, S), 0, 64, dtype=jnp.int32)
    positions = positions.at[0, 0].set(0)               # exercise padding_idx
    positions = positions.at[1, -1].set(0)

    out, table = constant_positional_embedding_forward(positions, table, D)
    out = jax.block_until_ready(out)

    # pure-JAX reference: index_select / gather
    ref = jnp.take(table, positions.reshape(-1), axis=0).reshape(B, S, D)

    assert out.shape == (B, S, D)
    assert bool(jnp.all(jnp.isfinite(out)))
    assert bool(jnp.allclose(out, ref, atol=1e-6, rtol=1e-6)), "mismatch vs reference"
    # padding positions must map to the zero row
    assert bool(jnp.all(out[0, 0] == 0.0)) and bool(jnp.all(out[1, -1] == 0.0))

    print("KERNEL_OK")
</pallas_src>

<mosaic_0001>
module attributes {stable_mosaic.version = 11 : i64} {
  func.func @pos_embed_kernel(%arg0: i32, %arg1: i32, %arg2: memref<2x8xi32, #tpu.memory_space<smem>>, %arg3: memref<1032x128xf32, #tpu.memory_space<vmem>>, %arg4: memref<1x8x128xf32, #tpu.memory_space<vmem>>) attributes {dimension_semantics = [#tpu.dimension_semantics<parallel>, #tpu.dimension_semantics<parallel>], iteration_bounds = array<i64: 2, 1>, scalar_prefetch = 1 : i64, scratch_operands = 0 : i64, tpu.core_type = #tpu.core_type<tc>, window_params = [{pipeline_mode = #tpu.pipeline_mode<synchronous>, transform_indices = @transform_0, window_bounds = array<i64: 1032, 128>}, {transform_indices = @transform_1, window_bounds = array<i64: 1, 8, 128>}]} {
    %c8_i32 = arith.constant 8 : i32
    %0 = arith.muli %arg1, %c8_i32 : i32
    %c0_i32 = arith.constant 0 : i32
    %1 = arith.addi %0, %c0_i32 : i32
    %2 = arith.index_cast %arg0 : i32 to index
    %3 = arith.index_cast %1 : i32 to index
    %4 = memref.load %arg2[%2, %3] : memref<2x8xi32, #tpu.memory_space<smem>>
    %5 = arith.index_cast %4 : i32 to index
    %c0 = arith.constant 0 : index
    %6 = vector.load %arg3[%5, %c0] : memref<1032x128xf32, #tpu.memory_space<vmem>>, vector<1x128xf32>
    %c0_0 = arith.constant 0 : index
    %7 = arith.index_cast %c0_i32 : i32 to index
    %c0_1 = arith.constant 0 : index
    %8 = vector.load %arg4[%c0_0, %7, %c0_1] : memref<1x8x128xf32, #tpu.memory_space<vmem>>, vector<1x1x128xf32>
    %9 = vector.shape_cast %8 : vector<1x1x128xf32> to vector<1x128xf32>
    %10 = vector.shape_cast %6 : vector<1x128xf32> to vector<1x1x128xf32>
    tpu.vector_store %arg4[%c0_0, %7, %c0_1], %10 {strides = array<i32>} : memref<1x8x128xf32, #tpu.memory_space<vmem>>, vector<1x1x128xf32>,
    %c1_i32 = arith.constant 1 : i32
    %11 = arith.addi %0, %c1_i32 : i32
    %12 = arith.index_cast %arg0 : i32 to index
    %13 = arith.index_cast %11 : i32 to index
    %14 = memref.load %arg2[%12, %13] : memref<2x8xi32, #tpu.memory_space<smem>>
    %15 = arith.index_cast %14 : i32 to index
    %c0_2 = arith.constant 0 : index
    %16 = vector.load %arg3[%15, %c0_2] : memref<1032x128xf32, #tpu.memory_space<vmem>>, vector<1x128xf32>
    %c0_3 = arith.constant 0 : index
    %17 = arith.index_cast %c1_i32 : i32 to index
    %c0_4 = arith.constant 0 : index
    %18 = vector.load %arg4[%c0_3, %17, %c0_4] : memref<1x8x128xf32, #tpu.memory_space<vmem>>, vector<1x1x128xf32>
    %19 = vector.shape_cast %18 : vector<1x1x128xf32> to vector<1x128xf32>
    %20 = vector.shape_cast %16 : vector<1x128xf32> to vector<1x1x128xf32>
    tpu.vector_store %arg4[%c0_3, %17, %c0_4], %20 {strides = array<i32>} : memref<1x8x128xf32, #tpu.memory_space<vmem>>, vector<1x1x128xf32>,
    %c2_i32 = arith.constant 2 : i32
    %21 = arith.addi %0, %c2_i32 : i32
    %22 = arith.index_cast %arg0 : i32 to index
    %23 = arith.index_cast %21 : i32 to index
    %24 = memref.load %arg2[%22, %23] : memref<2x8xi32, #tpu.memory_space<smem>>
    %25 = arith.index_cast %24 : i32 to index
    %c0_5 = arith.constant 0 : index
    %26 = vector.load %arg3[%25, %c0_5] : memref<1032x128xf32, #tpu.memory_space<vmem>>, vector<1x128xf32>
    %c0_6 = arith.constant 0 : index
    %27 = arith.index_cast %c2_i32 : i32 to index
    %c0_7 = arith.constant 0 : index
    %28 = vector.load %arg4[%c0_6, %27, %c0_7] : memref<1x8x128xf32, #tpu.memory_space<vmem>>, vector<1x1x128xf32>
    %29 = vector.shape_cast %28 : vector<1x1x128xf32> to vector<1x128xf32>
    %30 = vector.shape_cast %26 : vector<1x128xf32> to vector<1x1x128xf32>
    tpu.vector_store %arg4[%c0_6, %27, %c0_7], %30 {strides = array<i32>} : memref<1x8x128xf32, #tpu.memory_space<vmem>>, vector<1x1x128xf32>,
    %c3_i32 = arith.constant 3 : i32
    %31 = arith.addi %0, %c3_i32 : i32
    %32 = arith.index_cast %arg0 : i32 to index
    %33 = arith.index_cast %31 : i32 to index
    %34 = memref.load %arg2[%32, %33] : memref<2x8xi32, #tpu.memory_space<smem>>
    %35 = arith.index_cast %34 : i32 to index
    %c0_8 = arith.constant 0 : index
    %36 = vector.load %arg3[%35, %c0_8] : memref<1032x128xf32, #tpu.memory_space<vmem>>, vector<1x128xf32>
    %c0_9 = arith.constant 0 : index
    %37 = arith.index_cast %c3_i32 : i32 to index
    %c0_10 = arith.constant 0 : index
    %38 = vector.load %arg4[%c0_9, %37, %c0_10] : memref<1x8x128xf32, #tpu.memory_space<vmem>>, vector<1x1x128xf32>
    %39 = vector.shape_cast %38 : vector<1x1x128xf32> to vector<1x128xf32>
    %40 = vector.shape_cast %36 : vector<1x128xf32> to vector<1x1x128xf32>
    tpu.vector_store %arg4[%c0_9, %37, %c0_10], %40 {strides = array<i32>} : memref<1x8x128xf32, #tpu.memory_space<vmem>>, vector<1x1x128xf32>,
    %c4_i32 = arith.constant 4 : i32
    %41 = arith.addi %0, %c4_i32 : i32
    %42 = arith.index_cast %arg0 : i32 to index
    %43 = arith.index_cast %41 : i32 to index
    %44 = memref.load %arg2[%42, %43] : memref<2x8xi32, #tpu.memory_space<smem>>
    %45 = arith.index_cast %44 : i32 to index
    %c0_11 = arith.constant 0 : index
    %46 = vector.load %arg3[%45, %c0_11] : memref<1032x128xf32, #tpu.memory_space<vmem>>, vector<1x128xf32>
    %c0_12 = arith.constant 0 : index
    %47 = arith.index_cast %c4_i32 : i32 to index
    %c0_13 = arith.constant 0 : index
    %48 = vector.load %arg4[%c0_12, %47, %c0_13] : memref<1x8x128xf32, #tpu.memory_space<vmem>>, vector<1x1x128xf32>
    %49 = vector.shape_cast %48 : vector<1x1x128xf32> to vector<1x128xf32>
    %50 = vector.shape_cast %46 : vector<1x128xf32> to vector<1x1x128xf32>
    tpu.vector_store %arg4[%c0_12, %47, %c0_13], %50 {strides = array<i32>} : memref<1x8x128xf32, #tpu.memory_space<vmem>>, vector<1x1x128xf32>,
    %c5_i32 = arith.constant 5 : i32
    %51 = arith.addi %0, %c5_i32 : i32
    %52 = arith.index_cast %arg0 : i32 to index
    %53 = arith.index_cast %51 : i32 to index
    %54 = memref.load %arg2[%52, %53] : memref<2x8xi32, #tpu.memory_space<smem>>
    %55 = arith.index_cast %54 : i32 to index
    %c0_14 = arith.constant 0 : index
    %56 = vector.load %arg3[%55, %c0_14] : memref<1032x128xf32, #tpu.memory_space<vmem>>, vector<1x128xf32>
    %c0_15 = arith.constant 0 : index
    %57 = arith.index_cast %c5_i32 : i32 to index
    %c0_16 = arith.constant 0 : index
    %58 = vector.load %arg4[%c0_15, %57, %c0_16] : memref<1x8x128xf32, #tpu.memory_space<vmem>>, vector<1x1x128xf32>
    %59 = vector.shape_cast %58 : vector<1x1x128xf32> to vector<1x128xf32>
    %60 = vector.shape_cast %56 : vector<1x128xf32> to vector<1x1x128xf32>
    tpu.vector_store %arg4[%c0_15, %57, %c0_16], %60 {strides = array<i32>} : memref<1x8x128xf32, #tpu.memory_space<vmem>>, vector<1x1x128xf32>,
    %c6_i32 = arith.constant 6 : i32
    %61 = arith.addi %0, %c6_i32 : i32
    %62 = arith.index_cast %arg0 : i32 to index
    %63 = arith.index_cast %61 : i32 to index
    %64 = memref.load %arg2[%62, %63] : memref<2x8xi32, #tpu.memory_space<smem>>
    %65 = arith.index_cast %64 : i32 to index
    %c0_17 = arith.constant 0 : index
    %66 = vector.load %arg3[%65, %c0_17] : memref<1032x128xf32, #tpu.memory_space<vmem>>, vector<1x128xf32>
    %c0_18 = arith.constant 0 : index
    %67 = arith.index_cast %c6_i32 : i32 to index
    %c0_19 = arith.constant 0 : index
    %68 = vector.load %arg4[%c0_18, %67, %c0_19] : memref<1x8x128xf32, #tpu.memory_space<vmem>>, vector<1x1x128xf32>
    %69 = vector.shape_cast %68 : vector<1x1x128xf32> to vector<1x128xf32>
    %70 = vector.shape_cast %66 : vector<1x128xf32> to vector<1x1x128xf32>
    tpu.vector_store %arg4[%c0_18, %67, %c0_19], %70 {strides = array<i32>} : memref<1x8x128xf32, #tpu.memory_space<vmem>>, vector<1x1x128xf32>,
    %c7_i32 = arith.constant 7 : i32
    %71 = arith.addi %0, %c7_i32 : i32
    %72 = arith.index_cast %arg0 : i32 to index
    %73 = arith.index_cast %71 : i32 to index
    %74 = memref.load %arg2[%72, %73] : memref<2x8xi32, #tpu.memory_space<smem>>
    %75 = arith.index_cast %74 : i32 to index
    %c0_20 = arith.constant 0 : index
    %76 = vector.load %arg3[%75, %c0_20] : memref<1032x128xf32, #tpu.memory_space<vmem>>, vector<1x128xf32>
    %c0_21 = arith.constant 0 : index
    %77 = arith.index_cast %c7_i32 : i32 to index
    %c0_22 = arith.constant 0 : index
    %78 = vector.load %arg4[%c0_21, %77, %c0_22] : memref<1x8x128xf32, #tpu.memory_space<vmem>>, vector<1x1x128xf32>
    %79 = vector.shape_cast %78 : vector<1x1x128xf32> to vector<1x128xf32>
    %80 = vector.shape_cast %76 : vector<1x128xf32> to vector<1x1x128xf32>
    tpu.vector_store %arg4[%c0_21, %77, %c0_22], %80 {strides = array<i32>} : memref<1x8x128xf32, #tpu.memory_space<vmem>>, vector<1x1x128xf32>,
    %c8_i32_23 = arith.constant 8 : i32
    return
  }
  func.func @transform_0(%arg0: i32, %arg1: i32, %arg2: memref<2x8xi32, #tpu.memory_space<smem>>) -> (i32, i32) {
    %c0_i32 = arith.constant 0 : i32
    %c0_i32_0 = arith.constant 0 : i32
    %c0_i32_1 = arith.constant 0 : i32
    return %c0_i32, %c0_i32_0 : i32, i32
  }
  func.func @transform_1(%arg0: i32, %arg1: i32, %arg2: memref<2x8xi32, #tpu.memory_space<smem>>) -> (i32, i32, i32) {
    %c0_i32 = arith.constant 0 : i32
    %c0_i32_0 = arith.constant 0 : i32
    return %arg0, %arg1, %c0_i32 : i32, i32, i32
  }
}

</mosaic_0001>

<llo_original>
// kernel: tpu_custom_call.1
$region0: #{tpu_custom_call.1}
  #allocation0 [shape = 'u32[]', space=smem, size = 0x4, offset = 0x4, fixed_abs, tag = 'smem constant byte address 0x4 - core index']
  #allocation1 [shape = 'u32[72,128]{1,0:T(1,128)}', space=vmem, size = 0x9000, scoped, tag = 'internal scratch']
  #allocation2 [shape = 's32[1]{0}', space=sflag, size = 0x4, scoped, tag = 'scoped memory for tpu_custom_call.1']
  #allocation3 [shape = 'u8[1024]{0}', space=smem, size = 0x400, scoped, tag = 'prefetched SMEM operand 0']
  %s0 = inlined_call_operand.hbm [shape: s32[2,8], index: 0, kind: input, shape index: {}]
  %s1 = inlined_call_operand.hbm [shape: f32[1032,128], index: 1, kind: input, shape index: {}]
  %s2 = inlined_call_operand.hbm [shape: f32[2,8,128], index: 2, kind: output, shape index: {}]
  %s3 = sld [smem:[#allocation0]]
  $region41: #{tpu_custom_call.1} parent=0
    _
  %s5 = ssub.s32 1, %s3
  %s6 = scalar_select 0, %s5, %s3
  %s8 = sshll.u32 %s0, 4
  %s9 = int_to_ptr.hbm [resolvable:$true] %s8
  %11 = dma.hbm_to_smem %s9, 32, [#allocation3], [#allocation2]
  %13 = dma.done [#allocation2], 32
  %14 = sfence
  $region1: #{tpu_custom_call.1} parent=0
    #allocation4 [shape = 'u8[528384]{0}', space=vmem, size = 0x81000, scoped, tag = 'input window, operand 1, single buffered']
    #allocation5 [shape = 's32[2]{0}', space=sflag, size = 0x8, scoped, tag = 'scoped memory for tpu_custom_call.1']
    #allocation6 [shape = 's32[2]{0}', space=sflag, size = 0x8, scoped, tag = 'scoped memory for tpu_custom_call.1']
    #allocation7 [shape = 'u8[8192]{0}', space=vmem, size = 0x2000, scoped, tag = 'output window, operand 0']
    %15 = vsyncpa [#allocation5], 0
    %16 = vsyncpa [#allocation6], 0
    %s17 = scalar_lea.sflag [#allocation6], 1
    %18 = vsyncpa %s17, 0
    loop: start=0, step=1, limit=4
    $region2: #{tpu_custom_call.1} parent=1 // loop_pre_header
      _
    $region3: #{tpu_custom_call.1} parent=1 // loop_header
      %s20 = sphi 0, %s24
      %p21 = scmp.ge.s32.totalorder %s20, 4
      %s27 = sphi 0, %s39
      %s28 = sphi 0, %s35
      %s29 = sphi 0, %s27
      %s30 = sphi 0, %s28
      %s31 = sphi 0, %s29
      %s32 = sphi 0, %s30
      %s40 = sphi 0, %s40
      %s42 = sphi 0, %s40
      %s43 = sphi 0, %s42
      %s57 = sphi 0, %s43
      %s65 = sphi 0, %s67
      %s68 = sphi 0, %s65
      %s69 = sphi 0, %s68
      %s85 = sphi 0, %s69
    $region4: #{tpu_custom_call.1} parent=1 // loop_header_branch
      %23 = sbr.rel (%p21) target = $region8
    $region5: #{tpu_custom_call.1} parent=1 // loop_body
      %s25 = ssub.s32 %s20, 1
      %s26 = ssub.s32 %s20, 2
      %s33 = sadd.s32 1, %s28
      %p34 = scmp.ge.s32.totalorder %s33, 1
      %s35 = scalar_select %p34, 0, %s33
      %s36 = sadd.s32 1, %s27
      %s37 = scalar_select %p34, %s36, %s27
      %p38 = scmp.ge.s32.totalorder %s37, 2
      %s39 = scalar_select %p38, 0, %s37
      %s41 = sadd.s32 %s40, 1
      %p44 = scmp.eq.s32.totalorder %s20, 1
      %p45 = scmp.ne.s32.totalorder %s40, %s42
      %p46 = scmp.eq.s32.totalorder %s20, 0
      %p47 = por %p45, %p46
      %p48 = scmp.ne.s32.totalorder %s40, %s42
      %p49 = scmp.eq.s32.totalorder %s25, 1
      %p50 = por %p48, %p49
      %p51 = scmp.ne.s32.totalorder %s42, %s43
      %p52 = scmp.eq.s32.totalorder %s25, 0
      %p53 = por %p51, %p52
      %p54 = scmp.ne.s32.totalorder %s42, %s43
      %p55 = scmp.eq.s32.totalorder %s26, 1
      %p56 = por %p54, %p55
      %p58 = scmp.ne.s32.totalorder %s43, %s57
      %p59 = scmp.eq.s32.totalorder %s26, 0
      %p60 = por %p58, %p59
      %s61 = ssub.s32 %s27, %s39
      %s62 = ssub.s32 %s28, %s35
      %s63 = sor.u32 %s61, %s62
      %p64 = scmp.eq.s32.totalorder %s63, 0
      %s66 = sadd.s32 %s65, 1
      %s67 = scalar_select %p64, %s65, %s66
      %p70 = pneg %p64
      %p71 = scmp.eq.s32.totalorder %s20, 1
      %p72 = por %p70, %p71
      %p73 = scmp.ne.s32.totalorder %s65, %s68
      %p74 = scmp.eq.s32.totalorder %s20, 0
      %p75 = por %p73, %p74
      %p76 = scmp.ne.s32.totalorder %s65, %s68
      %p77 = scmp.eq.s32.totalorder %s25, 1
      %p78 = por %p76, %p77
      %p79 = scmp.ne.s32.totalorder %s68, %s69
      %p80 = scmp.eq.s32.totalorder %s25, 0
      %p81 = por %p79, %p80
      %p82 = scmp.ne.s32.totalorder %s68, %s69
      %p83 = scmp.eq.s32.totalorder %s26, 1
      %p84 = por %p82, %p83
      %p86 = scmp.ne.s32.totalorder %s69, %s85
      %p87 = scmp.eq.s32.totalorder %s26, 0
      %p88 = por %p86, %p87
      %p89 = scmp.le.s32.totalorder 1, %s20
      %p90 = scmp.lt.s32.totalorder %s20, 3
      %p91 = pnand %p89, %p90
      %p92 = pneg %p91
      // Predicated region
      $region9: #{tpu_custom_call.1} parent=5 // pred_check
        _
      $region10: #{tpu_custom_call.1} parent=5 // pred_check_branch
        %94 = sbr.rel (%p91) target = $region12
      $region11: #{tpu_custom_call.1} parent=5 // pred_region
        %s95 = ssub.s32 %s20, 1
        // Predicated region
        $region13: #{tpu_custom_call.1} parent=11 // pred_check
          %p96 = pneg %p53
        $region14: #{tpu_custom_call.1} parent=11 // pred_check_branch
          %98 = sbr.rel (%p96) target = $region16
        $region15: #{tpu_custom_call.1} parent=11 // pred_region
          %100 = vsyncadd [#allocation5], 0
          %s101 = sshll.u32 %s1, 4
          %s102 = int_to_ptr.hbm [resolvable:$true] %s101
          %s103 = sshll.u32 [#allocation4], 4
          %s104 = int_to_ptr.vmem [resolvable:$true] %s103
          %109 = dma.hbm_to_vmem [thread:$0]  %s102, 16512, %s104, [#allocation5], 128, 128, 8
        $region16: #{tpu_custom_call.1} parent=11 // pred_fallthru
          _
      $region12: #{tpu_custom_call.1} parent=5 // pred_fallthru
        _
      %p110 = scmp.lt.s32.totalorder %s20, 2
      // Predicated region
      $region17: #{tpu_custom_call.1} parent=5 // pred_check
        %p111 = pneg %p110
      $region18: #{tpu_custom_call.1} parent=5 // pred_check_branch
        %113 = sbr.rel (%p111) target = $region20
      $region19: #{tpu_custom_call.1} parent=5 // pred_region
        _
      $region20: #{tpu_custom_call.1} parent=5 // pred_fallthru
        _
      %p114 = scmp.le.s32.totalorder 1, %s20
      %p115 = scmp.lt.s32.totalorder %s20, 3
      %p116 = pnand %p114, %p115
      %p117 = pneg %p116
      // Predicated region
      $region21: #{tpu_custom_call.1} parent=5 // pred_check
        _
      $region22: #{tpu_custom_call.1} parent=5 // pred_check_branch
        %119 = sbr.rel (%p116) target = $region24
      $region23: #{tpu_custom_call.1} parent=5 // pred_region
        %s120 = ssub.s32 %s20, 1
        // Predicated region
        $region25: #{tpu_custom_call.1} parent=23 // pred_check
          %p121 = pneg %p53
        $region26: #{tpu_custom_call.1} parent=23 // pred_check_branch
          %123 = sbr.rel (%p121) target = $region28
        $region27: #{tpu_custom_call.1} parent=23 // pred_region
          %125 = dma.done [#allocation5], 16512
        $region28: #{tpu_custom_call.1} parent=23 // pred_fallthru
          _
        %p126 = pneg %p53
        %p127 = pneg %p50
        %p128 = pneg %p81
        %p129 = pneg %p78
        %s130 = sand.u32 %s68, 1
        %s131 = scalar_lea.sflag [#allocation6], %s130
        %s132 = sand.u32 %s68, 1
        %s133 = smul.addr %s132, 8
        %s134 = scalar_lea.vmem [#allocation7], %s133
        %s135 = smul.u32 %s30, 8
        %s136 = sshra.s32 %s135, 7
        %s137 = sand.u32 %s135, 127
        %s138 = sadd.s32 %s136, %s29
        %s139 = smul.u32 %s138, 128
        %s140 = sshra.s32 %s135, 7
        %s141 = sand.u32 %s135, 127
        %s142 = sadd.s32 %s139, %s141
        %s143 = sld [smem:[#allocation3 + %s142]]
        %s144 = scalar_lea.vmem [#allocation4], %s143
        %v145 = vld [vmem:[%s144] sm:$0x1]
        %146 = vst [vmem:[%s134] sm:$0x1] %v145
        %s147 = sadd.s32 %s135, 1
        %s148 = sshra.s32 %s147, 7
        %s149 = sand.u32 %s147, 127
        %s150 = sadd.s32 %s148, %s29
        %s151 = smul.u32 %s150, 128
        %s152 = sshra.s32 %s147, 7
        %s153 = sand.u32 %s147, 127
        %s154 = sadd.s32 %s151, %s153
        %s155 = sld [smem:[#allocation3 + %s154]]
        %s156 = scalar_lea.vmem [#allocation4], %s155
        %v157 = vld [vmem:[%s156] sm:$0x1]
        %158 = vst [vmem:[%s134 + $0x1] sm:$0x1] %v157
        %s159 = sadd.s32 %s135, 2
        %s160 = sshra.s32 %s159, 7
        %s161 = sand.u32 %s159, 127
        %s162 = sadd.s32 %s160, %s29
        %s163 = smul.u32 %s162, 128
        %s164 = sshra.s32 %s159, 7
        %s165 = sand.u32 %s159, 127
        %s166 = sadd.s32 %s163, %s165
        %s167 = sld [smem:[#allocation3 + %s166]]
        %s168 = scalar_lea.vmem [#allocation4], %s167
        %v169 = vld [vmem:[%s168] sm:$0x1]
        %170 = vst [vmem:[%s134 + $0x2] sm:$0x1] %v169
        %s171 = sadd.s32 %s135, 3
        %s172 = sshra.s32 %s171, 7
        %s173 = sand.u32 %s171, 127
        %s174 = sadd.s32 %s172, %s29
        %s175 = smul.u32 %s174, 128
        %s176 = sshra.s32 %s171, 7
        %s177 = sand.u32 %s171, 127
        %s178 = sadd.s32 %s175, %s177
        %s179 = sld [smem:[#allocation3 + %s178]]
        %s180 = scalar_lea.vmem [#allocation4], %s179
        %v181 = vld [vmem:[%s180] sm:$0x1]
        %182 = vst [vmem:[%s134 + $0x3] sm:$0x1] %v181
        %s183 = sadd.s32 %s135, 4
        %s184 = sshra.s32 %s183, 7
        %s185 = sand.u32 %s183, 127
        %s186 = sadd.s32 %s184, %s29
        %s187 = smul.u32 %s186, 128
        %s188 = sshra.s32 %s183, 7
        %s189 = sand.u32 %s183, 127
        %s190 = sadd.s32 %s187, %s189
        %s191 = sld [smem:[#allocation3 + %s190]]
        %s192 = scalar_lea.vmem [#allocation4], %s191
        %v193 = vld [vmem:[%s192] sm:$0x1]
        %194 = vst [vmem:[%s134 + $0x4] sm:$0x1] %v193
        %s195 = sadd.s32 %s135, 5
        %s196 = sshra.s32 %s195, 7
        %s197 = sand.u32 %s195, 127
        %s198 = sadd.s32 %s196, %s29
        %s199 = smul.u32 %s198, 128
        %s200 = sshra.s32 %s195, 7
        %s201 = sand.u32 %s195, 127
        %s202 = sadd.s32 %s199, %s201
        %s203 = sld [smem:[#allocation3 + %s202]]
        %s204 = scalar_lea.vmem [#allocation4], %s203
        %v205 = vld [vmem:[%s204] sm:$0x1]
        %206 = vst [vmem:[%s134 + $0x5] sm:$0x1] %v205
        %s207 = sadd.s32 %s135, 6
        %s208 = sshra.s32 %s207, 7
        %s209 = sand.u32 %s207, 127
        %s210 = sadd.s32 %s208, %s29
        %s211 = smul.u32 %s210, 128
        %s212 = sshra.s32 %s207, 7
        %s213 = sand.u32 %s207, 127
        %s214 = sadd.s32 %s211, %s213
        %s215 = sld [smem:[#allocation3 + %s214]]
        %s216 = scalar_lea.vmem [#allocation4], %s215
        %v217 = vld [vmem:[%s216] sm:$0x1]
        %218 = vst [vmem:[%s134 + $0x6] sm:$0x1] %v217
        %s219 = sadd.s32 %s135, 7
        %s220 = sshra.s32 %s219, 7
        %s221 = sand.u32 %s219, 127
        %s222 = sadd.s32 %s220, %s29
        %s223 = smul.u32 %s222, 128
        %s224 = sshra.s32 %s219, 7
        %s225 = sand.u32 %s219, 127
        %s226 = sadd.s32 %s223, %s225
        %s227 = sld [smem:[#allocation3 + %s226]]
        %s228 = scalar_lea.vmem [#allocation4], %s227
        %v229 = vld [vmem:[%s228] sm:$0x1]
        %230 = vst [vmem:[%s134 + $0x7] sm:$0x1] %v229
        %s231 = sand.u32 %s68, 1
        %s232 = scalar_lea.sflag [#allocation6], %s231
        %s233 = sand.u32 %s68, 1
        %s234 = smul.addr %s233, 8
        %s235 = scalar_lea.vmem [#allocation7], %s234
        // Predicated region
        $region29: #{tpu_custom_call.1} parent=23 // pred_check
          %p236 = pneg %p78
        $region30: #{tpu_custom_call.1} parent=23 // pred_check_branch
          %238 = sbr.rel (%p236) target = $region32
        $region31: #{tpu_custom_call.1} parent=23 // pred_region
          %240 = vsyncadd %s232, 0
          %s241 = sadd.s32 %s30, %s29
          %s242 = smul.addr %s241, 8
          %s243 = scalar_lea.hbm %s2, %s242
          %s245 = sshll.u32 %s235, 4
          %s246 = int_to_ptr.vmem [resolvable:$true] %s245
          %s247 = sshll.u32 %s243, 4
          %s248 = int_to_ptr.hbm [resolvable:$true] %s247
          %250 = dma.vmem_to_hbm [thread:$0]  %s246, 128, %s248, %s232
        $region32: #{tpu_custom_call.1} parent=23 // pred_fallthru
          _
      $region24: #{tpu_custom_call.1} parent=5 // pred_fallthru
        _
      %p251 = scmp.le.s32.totalorder 2, %s20
      // Predicated region
      $region33: #{tpu_custom_call.1} parent=5 // pred_check
        %p252 = pneg %p251
      $region34: #{tpu_custom_call.1} parent=5 // pred_check_branch
        %254 = sbr.rel (%p252) target = $region36
      $region35: #{tpu_custom_call.1} parent=5 // pred_region
        %s255 = ssub.s32 %s20, 2
        // Predicated region
        $region37: #{tpu_custom_call.1} parent=35 // pred_check
          %p256 = pneg %p84
        $region38: #{tpu_custom_call.1} parent=35 // pred_check_branch
          %258 = sbr.rel (%p256) target = $region40
        $region39: #{tpu_custom_call.1} parent=35 // pred_region
          %s259 = sand.u32 %s69, 1
          %s260 = scalar_lea.sflag [#allocation6], %s259
          %s261 = sand.u32 %s69, 1
          %s262 = smul.addr %s261, 8
          %s263 = scalar_lea.vmem [#allocation7], %s262
          %265 = dma.done %s260, 128
        $region40: #{tpu_custom_call.1} parent=35 // pred_fallthru
          _
      $region36: #{tpu_custom_call.1} parent=5 // pred_fallthru
        _
    $region6: #{tpu_custom_call.1} parent=1 // loop_footer
      %s24 = sadd.s32 1, %s20
    $region7: #{tpu_custom_call.1} parent=1 // loop_footer_branch
      %19 = sbr.rel target = $region3
    $region8: #{tpu_custom_call.1} parent=1 // loop_exit
      _
    %266 = vsyncpa [#allocation5], 1
    %s267 = scalar_lea.sflag [#allocation5], 1
    %268 = vsyncpa %s267, 1
    %269 = vsyncpa [#allocation6], 1
    %s270 = scalar_lea.sflag [#allocation6], 1
    %271 = vsyncpa %s270, 1

</llo_original>
